<compile_context>
chip_gen: v6e
topology: v6e:2x2x1
jax: 0.10.0
libtpu: 0.0.40
codegen_flags: <defaults>
</compile_context>

<pallas_src>
import functools

import jax
import jax.numpy as jnp
from jax import lax
from jax.experimental import pallas as pl
from jax.experimental.pallas import tpu as pltpu

LANES = 128


def _tpu_defaults():
    """Returns (row_tile, cores, vmem_limit_bytes, use_core_parallel) per TPU generation."""
    kind = ""
    try:
        dev = jax.devices()[0]
        if dev.platform == "tpu":
            kind = dev.device_kind.lower()
    except Exception:
        pass
    if "v7" in kind:
        # 8 MiB f32 blocks; 64 MiB physical VMEM per TC -> keep headroom.
        return 16384, 2, 48 << 20, True
    if "v6" in kind:
        return 8192, 1, 64 << 20, False
    if "v5p" in kind or "v4" in kind:
        # Megacore chips: 2 TCs, classic "parallel" split.
        return 8192, 2, 64 << 20, False
    if "v5" in kind:
        return 4096, 1, 64 << 20, False
    return 8192, 1, 64 << 20, False


def _nonneg_sq_sum_kernel(x_ref, out_ref, *, rows, rt, bpc, needs_mask, fold):
    """Accumulates sum(min(x,0)^2) folded to an (fold, 128) per-core output block."""
    c = pl.program_id(0)   # core-split axis
    i = pl.program_id(1)   # sequential reduction axis

    @pl.when(i == 0)
    def _init():
        out_ref[...] = jnp.zeros_like(out_ref)

    x = x_ref[...].astype(jnp.float32)   # cast in-vreg; keeps f32 VPU path on v5e
    m = jnp.minimum(x, 0.0)              # one VPU op vs compare+select
    sq = m * m

    def _fold(v):
        if fold == rt:
            return v
        # (rt,128) -> (rt//fold, fold, 128) is a layout-preserving split of the
        # sublane-major dim; the axis-0 sum is fold//8 independent vreg-add chains.
        return v.reshape(rt // fold, fold, LANES).sum(axis=0)

    if needs_mask:
        row0 = (c * bpc + i) * rt

        @pl.when(row0 + rt <= rows)       # steady state: no mask cost
        def _bulk():
            out_ref[...] += _fold(sq)

        @pl.when(row0 + rt > rows)        # final partial / duplicated block only
        def _edge():
            ridx = lax.broadcasted_iota(jnp.int32, (rt, LANES), 0) + row0
            out_ref[...] += _fold(jnp.where(ridx < rows, sq, 0.0))
    else:
        out_ref[...] += _fold(sq)


def non_negativity_log_prior(image, beta=1.0, row_tile=None, cores=None):
    """Computes 0.5 * beta * sum(min(image, 0)^2) via a Pallas TPU kernel.

    image: any shape, float dtype (f32/bf16/...). Returns a float32 scalar.
    """
    flat = image.reshape(-1)                 # free reshape, native dtype
    n = flat.shape[0]
    lane_bulk = (n // LANES) * LANES
    rows = lane_bulk // LANES

    gen_row_tile, gen_cores, vmem_limit, use_core_parallel = _tpu_defaults()
    if row_tile is None:
        row_tile = gen_row_tile
    if cores is None:
        cores = gen_cores

    parts = []

    # Tiny lane tail (< 128 elements): plain jnp.
    # TODO(synk): for n % 128 != 0 the prefix slice below costs one extra HBM
    # pass; a 1-D-block kernel variant with in-kernel flat-index masking would
    # avoid it (spec inputs are (B,1,256,256) and always 128-aligned).
    if lane_bulk < n:
        t = flat[lane_bulk:].astype(jnp.float32)
        parts.append(jnp.sum(jnp.square(jnp.minimum(t, 0.0))))

    if rows > 0:
        x2d = (flat[:lane_bulk] if lane_bulk < n else flat).reshape(rows, LANES)

        # Sublane quantum for the input dtype (8 for 4B, 16 for 2B, 32 for 1B).
        q = max(8, 32 // max(1, int(x2d.dtype.itemsize)))
        row_tile_eff = max(q, (int(row_tile) // q) * q)

        # Row tile: either the full row extent (legal: block == array dim) or a
        # q-aligned tile, so the (8,128) rule always holds.
        rt = min(row_tile_eff, rows)
        nb = pl.cdiv(rows, rt)               # real number of row blocks
        ncores = max(1, min(int(cores), nb)) # never split further than the blocks
        bpc = pl.cdiv(nb, ncores)            # blocks per core
        # Mask needed iff there is a partial last block or a duplicated block.
        needs_mask = (ncores * bpc * rt) != rows

        # Fold height: largest power-of-two divisor of rt up to 256 (identity
        # fold for tiny / odd row counts, which only occur when nb == 1).
        F = rt
        for cand in (256, 128, 64, 32, 16, 8):
            if rt % cand == 0:
                F = cand
                break

        kernel = functools.partial(
            _nonneg_sq_sum_kernel,
            rows=rows, rt=rt, bpc=bpc, needs_mask=needs_mask, fold=F,
        )

        if use_core_parallel and ncores > 1 and hasattr(pltpu, "CORE_PARALLEL"):
            dims = (pltpu.CORE_PARALLEL, getattr(pltpu, "ARBITRARY", "arbitrary"))
        else:
            dims = ("parallel", "arbitrary")

        cost = pl.CostEstimate(
            flops=3 * lane_bulk,
            transcendentals=0,
            bytes_accessed=int(lane_bulk * x2d.dtype.itemsize) + ncores * F * LANES * 4,
        )

        partials = pl.pallas_call(
            kernel,
            out_shape=jax.ShapeDtypeStruct((ncores * F, LANES), jnp.float32),
            grid_spec=pltpu.PrefetchScalarGridSpec(
                num_scalar_prefetch=0,
                grid=(ncores, bpc),
                in_specs=[
                    pl.BlockSpec(
                        (rt, LANES),
                        # Clamp so a core with fewer real blocks re-reads the last
                        # valid block (its contribution is masked to zero).
                        lambda c, i: (jnp.minimum(c * bpc + i, nb - 1), 0),
                    )
                ],
                out_specs=pl.BlockSpec((F, LANES), lambda c, i: (c, 0)),
            ),
            compiler_params=pltpu.CompilerParams(
                dimension_semantics=dims,
                vmem_limit_bytes=int(vmem_limit),
            ),
            cost_estimate=cost,
        )(x2d)
        parts.append(jnp.sum(partials))      # <= 2*256*128 elements: trivial final reduce

    if not parts:
        return jnp.zeros((), jnp.float32)

    total = parts[0]
    for p in parts[1:]:
        total = total + p
    return (jnp.asarray(beta, jnp.float32) * jnp.float32(0.5)) * total


def _reference_loss(image, beta):
    xf = image.astype(jnp.float32)
    return jnp.float32(0.5) * jnp.asarray(beta, jnp.float32) * jnp.sum(
        jnp.where(xf < 0, xf, 0.0) ** 2
    )


if __name__ == "__main__":
    key = jax.random.PRNGKey(0)
    k1, k2, k3, k4, k5 = jax.random.split(key, 5)

    checks = [
        # (image, beta, kwargs) — primary shape per the module spec (batch, 1, 256, 256)
        (jax.random.normal(k1, (2, 1, 256, 256), jnp.float32), 1.5, {}),
        # multi-block grid, forced 2-core split, partial + duplicated block masking paths
        (jax.random.normal(k2, (1, 1, 200, 128), jnp.float32), 1.0,
         dict(row_tile=48, cores=2)),
        # native bf16 input path (cast to f32 inside the kernel)
        (jax.random.normal(k3, (2, 1, 64, 64), jnp.float32).astype(jnp.bfloat16), 0.5, {}),
        # lane-tail path (element count not a multiple of 128)
        (jax.random.normal(k4, (1, 1, 100, 37), jnp.float32), 2.0, {}),
        # tiny input (rows < 8 -> identity fold path)
        (jax.random.normal(k5, (2, 1, 16, 16), jnp.float32), 1.0, {}),
    ]

    for img, beta, kw in checks:
        loss = jax.block_until_ready(non_negativity_log_prior(img, beta=beta, **kw))
        ref = jax.block_until_ready(_reference_loss(img, beta))
        assert jnp.allclose(loss, ref, rtol=1e-4, atol=1e-4), (img.shape, float(loss), float(ref))

    print("KERNEL_OK")
</pallas_src>

<mosaic_0001>
module attributes {stable_mosaic.version = 11 : i64} {
  func.func @_nonneg_sq_sum_kernel(%arg0: i32, %arg1: i32, %arg2: memref<1024x128xf32, #tpu.memory_space<vmem>>, %arg3: memref<256x128xf32, #tpu.memory_space<vmem>>) attributes {dimension_semantics = [#tpu.dimension_semantics<parallel>, #tpu.dimension_semantics<arbitrary>], iteration_bounds = array<i64: 1, 1>, scalar_prefetch = 0 : i64, scratch_operands = 0 : i64, tpu.core_type = #tpu.core_type<tc>, window_params = [{transform_indices = @transform_0, window_bounds = array<i64: 1024, 128>}, {transform_indices = @transform_1, window_bounds = array<i64: 256, 128>}]} {
    %c0_i32 = arith.constant 0 : i32
    %0 = arith.cmpi eq, %arg1, %c0_i32 : i32
    %1 = arith.extui %0 : i1 to i32
    %c0_i32_0 = arith.constant 0 : i32
    %2 = arith.cmpi ne, %1, %c0_i32_0 : i32
    scf.if %2 {
      %cst_7 = arith.constant 0.000000e+00 : f32
      %12 = vector.broadcast %cst_7 : f32 to vector<256x128xf32>
      %c0_8 = arith.constant 0 : index
      %c0_9 = arith.constant 0 : index
      %13 = vector.load %arg3[%c0_8, %c0_9] : memref<256x128xf32, #tpu.memory_space<vmem>>, vector<256x128xf32>
      tpu.vector_store %arg3[%c0_8, %c0_9], %12 {strides = array<i32>} : memref<256x128xf32, #tpu.memory_space<vmem>>, vector<256x128xf32>,
    } else {
    }
    %c0 = arith.constant 0 : index
    %c0_1 = arith.constant 0 : index
    %3 = vector.load %arg2[%c0, %c0_1] : memref<1024x128xf32, #tpu.memory_space<vmem>>, vector<1024x128xf32>
    %cst = arith.constant 0.000000e+00 : f32
    %4 = vector.broadcast %cst : f32 to vector<1024x128xf32>
    %5 = arith.minimumf %3, %4 : vector<1024x128xf32>
    %6 = arith.mulf %5, %5 : vector<1024x128xf32>
    %c0_2 = arith.constant 0 : index
    %c0_3 = arith.constant 0 : index
    %7 = vector.load %arg3[%c0_2, %c0_3] : memref<256x128xf32, #tpu.memory_space<vmem>>, vector<256x128xf32>
    %8 = vector.shape_cast %6 : vector<1024x128xf32> to vector<4x256x128xf32>
    %cst_4 = arith.constant dense<0.000000e+00> : vector<256x128xf32>
    %9 = vector.multi_reduction <add>, %8, %cst_4 [0] : vector<4x256x128xf32> to vector<256x128xf32>
    %10 = arith.addf %7, %9 : vector<256x128xf32>
    %c0_5 = arith.constant 0 : index
    %c0_6 = arith.constant 0 : index
    %11 = vector.load %arg3[%c0_5, %c0_6] : memref<256x128xf32, #tpu.memory_space<vmem>>, vector<256x128xf32>
    tpu.vector_store %arg3[%c0_5, %c0_6], %10 {strides = array<i32>} : memref<256x128xf32, #tpu.memory_space<vmem>>, vector<256x128xf32>,
    return
  }
  func.func @transform_0(%arg0: i32, %arg1: i32) -> (i32, i32) {
    %c1_i32 = arith.constant 1 : i32
    %0 = arith.muli %arg0, %c1_i32 : i32
    %1 = arith.addi %0, %arg1 : i32
    %c0_i32 = arith.constant 0 : i32
    %2 = arith.minsi %1, %c0_i32 : i32
    %c0_i32_0 = arith.constant 0 : i32
    %c0_i32_1 = arith.constant 0 : i32
    return %2, %c0_i32_0 : i32, i32
  }
  func.func @transform_1(%arg0: i32, %arg1: i32) -> (i32, i32) {
    %c0_i32 = arith.constant 0 : i32
    %c0_i32_0 = arith.constant 0 : i32
    return %arg0, %c0_i32 : i32, i32
  }
}

</mosaic_0001>

<llo_original>
// kernel: tpu_custom_call.1
$region0: #{tpu_custom_call.1}
  #allocation0 [shape = 'u32[]', space=smem, size = 0x4, offset = 0x4, fixed_abs, tag = 'smem constant byte address 0x4 - core index']
  #allocation1 [shape = 'u32[144,128]{1,0:T(1,128)}', space=vmem, size = 0x12000, scoped, tag = 'internal scratch']
  %s0 = inlined_call_operand.hbm [shape: f32[1024,128], index: 0, kind: input, shape index: {}]
  %s1 = inlined_call_operand.hbm [shape: f32[256,128], index: 1, kind: output, shape index: {}]
  %s2 = sld [smem:[#allocation0]]
  $region22: #{tpu_custom_call.1} parent=0
    _
  %s4 = ssub.s32 1, %s2
  %s5 = scalar_select 0, %s4, %s2
  $region1: #{tpu_custom_call.1} parent=0
    #allocation2 [shape = 'u8[524288]{0}', space=vmem, size = 0x80000, scoped, tag = 'input window, operand 0, single buffered']
    #allocation3 [shape = 's32[1]{0}', space=sflag, size = 0x4, scoped, tag = 'scoped memory for tpu_custom_call.1']
    #allocation4 [shape = 's32[1]{0}', space=sflag, size = 0x4, scoped, tag = 'scoped memory for tpu_custom_call.1']
    #allocation5 [shape = 'u8[131072]{0}', space=vmem, size = 0x20000, scoped, tag = 'output window, operand 0, single buffered']
    %6 = vsyncpa [#allocation3], 0
    %7 = vsyncpa [#allocation4], 0
    // Predicated region
    $region2: #{tpu_custom_call.1} parent=1 // pred_check
      _
    $region3: #{tpu_custom_call.1} parent=1 // pred_check_branch
      %9 = sbr.rel (0) target = $region5
    $region4: #{tpu_custom_call.1} parent=1 // pred_region
      %s10 = sadd.s32 0, 0
      %p11 = scmp.lt.s32.totalorder %s10, 0
      %s12 = scalar_select %p11, %s10, 0
      %s13 = smul.u32 128, %s12
      %s15 = ssub.s32 16384, 16384
      %16 = vsyncadd [#allocation3], %s15
      %s17 = smul.addr %s13, 128
      %s18 = scalar_lea.hbm %s0, %s17
      %s19 = sshll.u32 [#allocation2], 4
      %s20 = int_to_ptr.vmem [resolvable:$true] %s19
      %25 = dma.hbm_to_vmem [thread:$0]  %s18, 16384, %s20, [#allocation3], 128, 128, 8
    $region5: #{tpu_custom_call.1} parent=1 // pred_fallthru
      _
    // Predicated region
    $region6: #{tpu_custom_call.1} parent=1 // pred_check
      _
    $region7: #{tpu_custom_call.1} parent=1 // pred_check_branch
      %27 = sbr.rel (0) target = $region9
    $region8: #{tpu_custom_call.1} parent=1 // pred_region
      %28 = dma.done [#allocation3], 16384
    $region9: #{tpu_custom_call.1} parent=1 // pred_fallthru
      _
    %s29 = sadd.s32 0, 0
    %p30 = scmp.lt.s32.totalorder %s29, 0
    %s31 = scalar_select %p30, %s29, 0
    %s32 = smul.u32 128, %s31
    %p33 = scmp.eq.s32.totalorder 0, 0
    // Predicated region
    $region10: #{tpu_custom_call.1} parent=1 // pred_check
      %p34 = pneg %p33
    $region11: #{tpu_custom_call.1} parent=1 // pred_check_branch
      %36 = sbr.rel (%p34) target = $region13
    $region12: #{tpu_custom_call.1} parent=1 // pred_region
      %37 = vst [vmem:[#allocation5] sm:$0xff] 0.0
      %38 = vst [vmem:[#allocation5 + $0x8] sm:$0xff] 0.0
      %39 = vst [vmem:[#allocation5 + $0x10] sm:$0xff] 0.0
      %40 = vst [vmem:[#allocation5 + $0x18] sm:$0xff] 0.0
      %41 = vst [vmem:[#allocation5 + $0x20] sm:$0xff] 0.0
      %42 = vst [vmem:[#allocation5 + $0x28] sm:$0xff] 0.0
      %43 = vst [vmem:[#allocation5 + $0x30] sm:$0xff] 0.0
      %44 = vst [vmem:[#allocation5 + $0x38] sm:$0xff] 0.0
      %45 = vst [vmem:[#allocation5 + $0x40] sm:$0xff] 0.0
      %46 = vst [vmem:[#allocation5 + $0x48] sm:$0xff] 0.0
      %47 = vst [vmem:[#allocation5 + $0x50] sm:$0xff] 0.0
      %48 = vst [vmem:[#allocation5 + $0x58] sm:$0xff] 0.0
      %49 = vst [vmem:[#allocation5 + $0x60] sm:$0xff] 0.0
      %50 = vst [vmem:[#allocation5 + $0x68] sm:$0xff] 0.0
      %51 = vst [vmem:[#allocation5 + $0x70] sm:$0xff] 0.0
      %52 = vst [vmem:[#allocation5 + $0x78] sm:$0xff] 0.0
      %53 = vst [vmem:[#allocation5 + $0x80] sm:$0xff] 0.0
      %54 = vst [vmem:[#allocation5 + $0x88] sm:$0xff] 0.0
      %55 = vst [vmem:[#allocation5 + $0x90] sm:$0xff] 0.0
      %56 = vst [vmem:[#allocation5 + $0x98] sm:$0xff] 0.0
      %57 = vst [vmem:[#allocation5 + $0xa0] sm:$0xff] 0.0
      %58 = vst [vmem:[#allocation5 + $0xa8] sm:$0xff] 0.0
      %59 = vst [vmem:[#allocation5 + $0xb0] sm:$0xff] 0.0
      %60 = vst [vmem:[#allocation5 + $0xb8] sm:$0xff] 0.0
      %61 = vst [vmem:[#allocation5 + $0xc0] sm:$0xff] 0.0
      %62 = vst [vmem:[#allocation5 + $0xc8] sm:$0xff] 0.0
      %63 = vst [vmem:[#allocation5 + $0xd0] sm:$0xff] 0.0
      %64 = vst [vmem:[#allocation5 + $0xd8] sm:$0xff] 0.0
      %65 = vst [vmem:[#allocation5 + $0xe0] sm:$0xff] 0.0
      %66 = vst [vmem:[#allocation5 + $0xe8] sm:$0xff] 0.0
      %67 = vst [vmem:[#allocation5 + $0xf0] sm:$0xff] 0.0
      %68 = vst [vmem:[#allocation5 + $0xf8] sm:$0xff] 0.0
    $region13: #{tpu_custom_call.1} parent=1 // pred_fallthru
      _
    %v69 = vld [vmem:[#allocation2] sm:$0xff]
    %v70 = vld [vmem:[#allocation2 + $0x8] sm:$0xff]
    %v71 = vld [vmem:[#allocation2 + $0x10] sm:$0xff]
    %v72 = vld [vmem:[#allocation2 + $0x18] sm:$0xff]
    %v73 = vld [vmem:[#allocation2 + $0x20] sm:$0xff]
    %v74 = vld [vmem:[#allocation2 + $0x28] sm:$0xff]
    %v75 = vld [vmem:[#allocation2 + $0x30] sm:$0xff]
    %v76 = vld [vmem:[#allocation2 + $0x38] sm:$0xff]
    %v77 = vld [vmem:[#allocation2 + $0x40] sm:$0xff]
    %v78 = vld [vmem:[#allocation2 + $0x48] sm:$0xff]
    %v79 = vld [vmem:[#allocation2 + $0x50] sm:$0xff]
    %v80 = vld [vmem:[#allocation2 + $0x58] sm:$0xff]
    %v81 = vld [vmem:[#allocation2 + $0x60] sm:$0xff]
    %v82 = vld [vmem:[#allocation2 + $0x68] sm:$0xff]
    %v83 = vld [vmem:[#allocation2 + $0x70] sm:$0xff]
    %v84 = vld [vmem:[#allocation2 + $0x78] sm:$0xff]
    %v85 = vld [vmem:[#allocation2 + $0x80] sm:$0xff]
    %v86 = vld [vmem:[#allocation2 + $0x88] sm:$0xff]
    %v87 = vld [vmem:[#allocation2 + $0x90] sm:$0xff]
    %v88 = vld [vmem:[#allocation2 + $0x98] sm:$0xff]
    %v89 = vld [vmem:[#allocation2 + $0xa0] sm:$0xff]
    %v90 = vld [vmem:[#allocation2 + $0xa8] sm:$0xff]
    %v91 = vld [vmem:[#allocation2 + $0xb0] sm:$0xff]
    %v92 = vld [vmem:[#allocation2 + $0xb8] sm:$0xff]
    %v93 = vld [vmem:[#allocation2 + $0xc0] sm:$0xff]
    %v94 = vld [vmem:[#allocation2 + $0xc8] sm:$0xff]
    %v95 = vld [vmem:[#allocation2 + $0xd0] sm:$0xff]
    %v96 = vld [vmem:[#allocation2 + $0xd8] sm:$0xff]
    %v97 = vld [vmem:[#allocation2 + $0xe0] sm:$0xff]
    %v98 = vld [vmem:[#allocation2 + $0xe8] sm:$0xff]
    %v99 = vld [vmem:[#allocation2 + $0xf0] sm:$0xff]
    %v100 = vld [vmem:[#allocation2 + $0xf8] sm:$0xff]
    %v101 = vld [vmem:[#allocation2 + $0x100] sm:$0xff]
    %v102 = vld [vmem:[#allocation2 + $0x108] sm:$0xff]
    %v103 = vld [vmem:[#allocation2 + $0x110] sm:$0xff]
    %v104 = vld [vmem:[#allocation2 + $0x118] sm:$0xff]
    %v105 = vld [vmem:[#allocation2 + $0x120] sm:$0xff]
    %v106 = vld [vmem:[#allocation2 + $0x128] sm:$0xff]
    %v107 = vld [vmem:[#allocation2 + $0x130] sm:$0xff]
    %v108 = vld [vmem:[#allocation2 + $0x138] sm:$0xff]
    %v109 = vld [vmem:[#allocation2 + $0x140] sm:$0xff]
    %v110 = vld [vmem:[#allocation2 + $0x148] sm:$0xff]
    %v111 = vld [vmem:[#allocation2 + $0x150] sm:$0xff]
    %v112 = vld [vmem:[#allocation2 + $0x158] sm:$0xff]
    %v113 = vld [vmem:[#allocation2 + $0x160] sm:$0xff]
    %v114 = vld [vmem:[#allocation2 + $0x168] sm:$0xff]
    %v115 = vld [vmem:[#allocation2 + $0x170] sm:$0xff]
    %v116 = vld [vmem:[#allocation2 + $0x178] sm:$0xff]
    %v117 = vld [vmem:[#allocation2 + $0x180] sm:$0xff]
    %v118 = vld [vmem:[#allocation2 + $0x188] sm:$0xff]
    %v119 = vld [vmem:[#allocation2 + $0x190] sm:$0xff]
    %v120 = vld [vmem:[#allocation2 + $0x198] sm:$0xff]
    %v121 = vld [vmem:[#allocation2 + $0x1a0] sm:$0xff]
    %v122 = vld [vmem:[#allocation2 + $0x1a8] sm:$0xff]
    %v123 = vld [vmem:[#allocation2 + $0x1b0] sm:$0xff]
    %v124 = vld [vmem:[#allocation2 + $0x1b8] sm:$0xff]
    %v125 = vld [vmem:[#allocation2 + $0x1c0] sm:$0xff]
    %v126 = vld [vmem:[#allocation2 + $0x1c8] sm:$0xff]
    %v127 = vld [vmem:[#allocation2 + $0x1d0] sm:$0xff]
    %v128 = vld [vmem:[#allocation2 + $0x1d8] sm:$0xff]
    %v129 = vld [vmem:[#allocation2 + $0x1e0] sm:$0xff]
    %v130 = vld [vmem:[#allocation2 + $0x1e8] sm:$0xff]
    %v131 = vld [vmem:[#allocation2 + $0x1f0] sm:$0xff]
    %v132 = vld [vmem:[#allocation2 + $0x1f8] sm:$0xff]
    %v133 = vld [vmem:[#allocation2 + $0x200] sm:$0xff]
    %v134 = vld [vmem:[#allocation2 + $0x208] sm:$0xff]
    %v135 = vld [vmem:[#allocation2 + $0x210] sm:$0xff]
    %v136 = vld [vmem:[#allocation2 + $0x218] sm:$0xff]
    %v137 = vld [vmem:[#allocation2 + $0x220] sm:$0xff]
    %v138 = vld [vmem:[#allocation2 + $0x228] sm:$0xff]
    %v139 = vld [vmem:[#allocation2 + $0x230] sm:$0xff]
    %v140 = vld [vmem:[#allocation2 + $0x238] sm:$0xff]
    %v141 = vld [vmem:[#allocation2 + $0x240] sm:$0xff]
    %v142 = vld [vmem:[#allocation2 + $0x248] sm:$0xff]
    %v143 = vld [vmem:[#allocation2 + $0x250] sm:$0xff]
    %v144 = vld [vmem:[#allocation2 + $0x258] sm:$0xff]
    %v145 = vld [vmem:[#allocation2 + $0x260] sm:$0xff]
    %v146 = vld [vmem:[#allocation2 + $0x268] sm:$0xff]
    %v147 = vld [vmem:[#allocation2 + $0x270] sm:$0xff]
    %v148 = vld [vmem:[#allocation2 + $0x278] sm:$0xff]
    %v149 = vld [vmem:[#allocation2 + $0x280] sm:$0xff]
    %v150 = vld [vmem:[#allocation2 + $0x288] sm:$0xff]
    %v151 = vld [vmem:[#allocation2 + $0x290] sm:$0xff]
    %v152 = vld [vmem:[#allocation2 + $0x298] sm:$0xff]
    %v153 = vld [vmem:[#allocation2 + $0x2a0] sm:$0xff]
    %v154 = vld [vmem:[#allocation2 + $0x2a8] sm:$0xff]
    %v155 = vld [vmem:[#allocation2 + $0x2b0] sm:$0xff]
    %v156 = vld [vmem:[#allocation2 + $0x2b8] sm:$0xff]
    %v157 = vld [vmem:[#allocation2 + $0x2c0] sm:$0xff]
    %v158 = vld [vmem:[#allocation2 + $0x2c8] sm:$0xff]
    %v159 = vld [vmem:[#allocation2 + $0x2d0] sm:$0xff]
    %v160 = vld [vmem:[#allocation2 + $0x2d8] sm:$0xff]
    %v161 = vld [vmem:[#allocation2 + $0x2e0] sm:$0xff]
    %v162 = vld [vmem:[#allocation2 + $0x2e8] sm:$0xff]
    %v163 = vld [vmem:[#allocation2 + $0x2f0] sm:$0xff]
    %v164 = vld [vmem:[#allocation2 + $0x2f8] sm:$0xff]
    %v165 = vld [vmem:[#allocation2 + $0x300] sm:$0xff]
    %v166 = vld [vmem:[#allocation2 + $0x308] sm:$0xff]
    %v167 = vld [vmem:[#allocation2 + $0x310] sm:$0xff]
    %v168 = vld [vmem:[#allocation2 + $0x318] sm:$0xff]
    %v169 = vld [vmem:[#allocation2 + $0x320] sm:$0xff]
    %v170 = vld [vmem:[#allocation2 + $0x328] sm:$0xff]
    %v171 = vld [vmem:[#allocation2 + $0x330] sm:$0xff]
    %v172 = vld [vmem:[#allocation2 + $0x338] sm:$0xff]
    %v173 = vld [vmem:[#allocation2 + $0x340] sm:$0xff]
    %v174 = vld [vmem:[#allocation2 + $0x348] sm:$0xff]
    %v175 = vld [vmem:[#allocation2 + $0x350] sm:$0xff]
    %v176 = vld [vmem:[#allocation2 + $0x358] sm:$0xff]
    %v177 = vld [vmem:[#allocation2 + $0x360] sm:$0xff]
    %v178 = vld [vmem:[#allocation2 + $0x368] sm:$0xff]
    %v179 = vld [vmem:[#allocation2 + $0x370] sm:$0xff]
    %v180 = vld [vmem:[#allocation2 + $0x378] sm:$0xff]
    %v181 = vld [vmem:[#allocation2 + $0x380] sm:$0xff]
    %v182 = vld [vmem:[#allocation2 + $0x388] sm:$0xff]
    %v183 = vld [vmem:[#allocation2 + $0x390] sm:$0xff]
    %v184 = vld [vmem:[#allocation2 + $0x398] sm:$0xff]
    %v185 = vld [vmem:[#allocation2 + $0x3a0] sm:$0xff]
    %v186 = vld [vmem:[#allocation2 + $0x3a8] sm:$0xff]
    %v187 = vld [vmem:[#allocation2 + $0x3b0] sm:$0xff]
    %v188 = vld [vmem:[#allocation2 + $0x3b8] sm:$0xff]
    %v189 = vld [vmem:[#allocation2 + $0x3c0] sm:$0xff]
    %v190 = vld [vmem:[#allocation2 + $0x3c8] sm:$0xff]
    %v191 = vld [vmem:[#allocation2 + $0x3d0] sm:$0xff]
    %v192 = vld [vmem:[#allocation2 + $0x3d8] sm:$0xff]
    %v193 = vld [vmem:[#allocation2 + $0x3e0] sm:$0xff]
    %v194 = vld [vmem:[#allocation2 + $0x3e8] sm:$0xff]
    %v195 = vld [vmem:[#allocation2 + $0x3f0] sm:$0xff]
    %v196 = vld [vmem:[#allocation2 + $0x3f8] sm:$0xff]
    %v197 = vmin.f32 %v69, 0.0
    %v198 = vmin.f32 %v70, 0.0
    %v199 = vmin.f32 %v71, 0.0
    %v200 = vmin.f32 %v72, 0.0
    %v201 = vmin.f32 %v73, 0.0
    %v202 = vmin.f32 %v74, 0.0
    %v203 = vmin.f32 %v75, 0.0
    %v204 = vmin.f32 %v76, 0.0
    %v205 = vmin.f32 %v77, 0.0
    %v206 = vmin.f32 %v78, 0.0
    %v207 = vmin.f32 %v79, 0.0
    %v208 = vmin.f32 %v80, 0.0
    %v209 = vmin.f32 %v81, 0.0
    %v210 = vmin.f32 %v82, 0.0
    %v211 = vmin.f32 %v83, 0.0
    %v212 = vmin.f32 %v84, 0.0
    %v213 = vmin.f32 %v85, 0.0
    %v214 = vmin.f32 %v86, 0.0
    %v215 = vmin.f32 %v87, 0.0
    %v216 = vmin.f32 %v88, 0.0
    %v217 = vmin.f32 %v89, 0.0
    %v218 = vmin.f32 %v90, 0.0
    %v219 = vmin.f32 %v91, 0.0
    %v220 = vmin.f32 %v92, 0.0
    %v221 = vmin.f32 %v93, 0.0
    %v222 = vmin.f32 %v94, 0.0
    %v223 = vmin.f32 %v95, 0.0
    %v224 = vmin.f32 %v96, 0.0
    %v225 = vmin.f32 %v97, 0.0
    %v226 = vmin.f32 %v98, 0.0
    %v227 = vmin.f32 %v99, 0.0
    %v228 = vmin.f32 %v100, 0.0
    %v229 = vmin.f32 %v101, 0.0
    %v230 = vmin.f32 %v102, 0.0
    %v231 = vmin.f32 %v103, 0.0
    %v232 = vmin.f32 %v104, 0.0
    %v233 = vmin.f32 %v105, 0.0
    %v234 = vmin.f32 %v106, 0.0
    %v235 = vmin.f32 %v107, 0.0
    %v236 = vmin.f32 %v108, 0.0
    %v237 = vmin.f32 %v109, 0.0
    %v238 = vmin.f32 %v110, 0.0
    %v239 = vmin.f32 %v111, 0.0
    %v240 = vmin.f32 %v112, 0.0
    %v241 = vmin.f32 %v113, 0.0
    %v242 = vmin.f32 %v114, 0.0
    %v243 = vmin.f32 %v115, 0.0
    %v244 = vmin.f32 %v116, 0.0
    %v245 = vmin.f32 %v117, 0.0
    %v246 = vmin.f32 %v118, 0.0
    %v247 = vmin.f32 %v119, 0.0
    %v248 = vmin.f32 %v120, 0.0
    %v249 = vmin.f32 %v121, 0.0
    %v250 = vmin.f32 %v122, 0.0
    %v251 = vmin.f32 %v123, 0.0
    %v252 = vmin.f32 %v124, 0.0
    %v253 = vmin.f32 %v125, 0.0
    %v254 = vmin.f32 %v126, 0.0
    %v255 = vmin.f32 %v127, 0.0
    %v256 = vmin.f32 %v128, 0.0
    %v257 = vmin.f32 %v129, 0.0
    %v258 = vmin.f32 %v130, 0.0
    %v259 = vmin.f32 %v131, 0.0
    %v260 = vmin.f32 %v132, 0.0
    %v261 = vmin.f32 %v133, 0.0
    %v262 = vmin.f32 %v134, 0.0
    %v263 = vmin.f32 %v135, 0.0
    %v264 = vmin.f32 %v136, 0.0
    %v265 = vmin.f32 %v137, 0.0
    %v266 = vmin.f32 %v138, 0.0
    %v267 = vmin.f32 %v139, 0.0
    %v268 = vmin.f32 %v140, 0.0
    %v269 = vmin.f32 %v141, 0.0
    %v270 = vmin.f32 %v142, 0.0
    %v271 = vmin.f32 %v143, 0.0
    %v272 = vmin.f32 %v144, 0.0
    %v273 = vmin.f32 %v145, 0.0
    %v274 = vmin.f32 %v146, 0.0
    %v275 = vmin.f32 %v147, 0.0
    %v276 = vmin.f32 %v148, 0.0
    %v277 = vmin.f32 %v149, 0.0
    %v278 = vmin.f32 %v150, 0.0
    %v279 = vmin.f32 %v151, 0.0
    %v280 = vmin.f32 %v152, 0.0
    %v281 = vmin.f32 %v153, 0.0
    %v282 = vmin.f32 %v154, 0.0
    %v283 = vmin.f32 %v155, 0.0
    %v284 = vmin.f32 %v156, 0.0
    %v285 = vmin.f32 %v157, 0.0
    %v286 = vmin.f32 %v158, 0.0
    %v287 = vmin.f32 %v159, 0.0
    %v288 = vmin.f32 %v160, 0.0
    %v289 = vmin.f32 %v161, 0.0
    %v290 = vmin.f32 %v162, 0.0
    %v291 = vmin.f32 %v163, 0.0
    %v292 = vmin.f32 %v164, 0.0
    %v293 = vmin.f32 %v165, 0.0
    %v294 = vmin.f32 %v166, 0.0
    %v295 = vmin.f32 %v167, 0.0
    %v296 = vmin.f32 %v168, 0.0
    %v297 = vmin.f32 %v169, 0.0
    %v298 = vmin.f32 %v170, 0.0
    %v299 = vmin.f32 %v171, 0.0
    %v300 = vmin.f32 %v172, 0.0
    %v301 = vmin.f32 %v173, 0.0
    %v302 = vmin.f32 %v174, 0.0
    %v303 = vmin.f32 %v175, 0.0
    %v304 = vmin.f32 %v176, 0.0
    %v305 = vmin.f32 %v177, 0.0
    %v306 = vmin.f32 %v178, 0.0
    %v307 = vmin.f32 %v179, 0.0
    %v308 = vmin.f32 %v180, 0.0
    %v309 = vmin.f32 %v181, 0.0
    %v310 = vmin.f32 %v182, 0.0
    %v311 = vmin.f32 %v183, 0.0
    %v312 = vmin.f32 %v184, 0.0
    %v313 = vmin.f32 %v185, 0.0
    %v314 = vmin.f32 %v186, 0.0
    %v315 = vmin.f32 %v187, 0.0
    %v316 = vmin.f32 %v188, 0.0
    %v317 = vmin.f32 %v189, 0.0
    %v318 = vmin.f32 %v190, 0.0
    %v319 = vmin.f32 %v191, 0.0
    %v320 = vmin.f32 %v192, 0.0
    %v321 = vmin.f32 %v193, 0.0
    %v322 = vmin.f32 %v194, 0.0
    %v323 = vmin.f32 %v195, 0.0
    %v324 = vmin.f32 %v196, 0.0
    %v325 = vmul.f32 %v197, %v197
    %v326 = vmul.f32 %v198, %v198
    %v327 = vmul.f32 %v199, %v199
    %v328 = vmul.f32 %v200, %v200
    %v329 = vmul.f32 %v201, %v201
    %v330 = vmul.f32 %v202, %v202
    %v331 = vmul.f32 %v203, %v203
    %v332 = vmul.f32 %v204, %v204
    %v333 = vmul.f32 %v205, %v205
    %v334 = vmul.f32 %v206, %v206
    %v335 = vmul.f32 %v207, %v207
    %v336 = vmul.f32 %v208, %v208
    %v337 = vmul.f32 %v209, %v209
    %v338 = vmul.f32 %v210, %v210
    %v339 = vmul.f32 %v211, %v211
    %v340 = vmul.f32 %v212, %v212
    %v341 = vmul.f32 %v213, %v213
    %v342 = vmul.f32 %v214, %v214
    %v343 = vmul.f32 %v215, %v215
    %v344 = vmul.f32 %v216, %v216
    %v345 = vmul.f32 %v217, %v217
    %v346 = vmul.f32 %v218, %v218
    %v347 = vmul.f32 %v219, %v219
    %v348 = vmul.f32 %v220, %v220
    %v349 = vmul.f32 %v221, %v221
    %v350 = vmul.f32 %v222, %v222
    %v351 = vmul.f32 %v223, %v223
    %v352 = vmul.f32 %v224, %v224
    %v353 = vmul.f32 %v225, %v225
    %v354 = vmul.f32 %v226, %v226
    %v355 = vmul.f32 %v227, %v227
    %v356 = vmul.f32 %v228, %v228
    %v357 = vmul.f32 %v229, %v229
    %v358 = vmul.f32 %v230, %v230
    %v359 = vmul.f32 %v231, %v231
    %v360 = vmul.f32 %v232, %v232
    %v361 = vmul.f32 %v233, %v233
    %v362 = vmul.f32 %v234, %v234
    %v363 = vmul.f32 %v235, %v235
    %v364 = vmul.f32 %v236, %v236
    %v365 = vmul.f32 %v237, %v237
    %v366 = vmul.f32 %v238, %v238
    %v367 = vmul.f32 %v239, %v239
    %v368 = vmul.f32 %v240, %v240
    %v369 = vmul.f32 %v241, %v241
    %v370 = vmul.f32 %v242, %v242
    %v371 = vmul.f32 %v243, %v243
    %v372 = vmul.f32 %v244, %v244
    %v373 = vmul.f32 %v245, %v245
    %v374 = vmul.f32 %v246, %v246
    %v375 = vmul.f32 %v247, %v247
    %v376 = vmul.f32 %v248, %v248
    %v377 = vmul.f32 %v249, %v249
    %v378 = vmul.f32 %v250, %v250
    %v379 = vmul.f32 %v251, %v251
    %v380 = vmul.f32 %v252, %v252
    %v381 = vmul.f32 %v253, %v253
    %v382 = vmul.f32 %v254, %v254
    %v383 = vmul.f32 %v255, %v255
    %v384 = vmul.f32 %v256, %v256
    %v385 = vmul.f32 %v257, %v257
    %v386 = vmul.f32 %v258, %v258
    %v387 = vmul.f32 %v259, %v259
    %v388 = vmul.f32 %v260, %v260
    %v389 = vmul.f32 %v261, %v261
    %v390 = vmul.f32 %v262, %v262
    %v391 = vmul.f32 %v263, %v263
    %v392 = vmul.f32 %v264, %v264
    %v393 = vmul.f32 %v265, %v265
    %v394 = vmul.f32 %v266, %v266
    %v395 = vmul.f32 %v267, %v267
    %v396 = vmul.f32 %v268, %v268
    %v397 = vmul.f32 %v269, %v269
    %v398 = vmul.f32 %v270, %v270
    %v399 = vmul.f32 %v271, %v271
    %v400 = vmul.f32 %v272, %v272
    %v401 = vmul.f32 %v273, %v273
    %v402 = vmul.f32 %v274, %v274
    %v403 = vmul.f32 %v275, %v275
    %v404 = vmul.f32 %v276, %v276
    %v405 = vmul.f32 %v277, %v277
    %v406 = vmul.f32 %v278, %v278
    %v407 = vmul.f32 %v279, %v279
    %v408 = vmul.f32 %v280, %v280
    %v409 = vmul.f32 %v281, %v281
    %v410 = vmul.f32 %v282, %v282
    %v411 = vmul.f32 %v283, %v283
    %v412 = vmul.f32 %v284, %v284
    %v413 = vmul.f32 %v285, %v285
    %v414 = vmul.f32 %v286, %v286
    %v415 = vmul.f32 %v287, %v287
    %v416 = vmul.f32 %v288, %v288
    %v417 = vmul.f32 %v289, %v289
    %v418 = vmul.f32 %v290, %v290
    %v419 = vmul.f32 %v291, %v291
    %v420 = vmul.f32 %v292, %v292
    %v421 = vmul.f32 %v293, %v293
    %v422 = vmul.f32 %v294, %v294
    %v423 = vmul.f32 %v295, %v295
    %v424 = vmul.f32 %v296, %v296
    %v425 = vmul.f32 %v297, %v297
    %v426 = vmul.f32 %v298, %v298
    %v427 = vmul.f32 %v299, %v299
    %v428 = vmul.f32 %v300, %v300
    %v429 = vmul.f32 %v301, %v301
    %v430 = vmul.f32 %v302, %v302
    %v431 = vmul.f32 %v303, %v303
    %v432 = vmul.f32 %v304, %v304
    %v433 = vmul.f32 %v305, %v305
    %v434 = vmul.f32 %v306, %v306
    %v435 = vmul.f32 %v307, %v307
    %v436 = vmul.f32 %v308, %v308
    %v437 = vmul.f32 %v309, %v309
    %v438 = vmul.f32 %v310, %v310
    %v439 = vmul.f32 %v311, %v311
    %v440 = vmul.f32 %v312, %v312
    %v441 = vmul.f32 %v313, %v313
    %v442 = vmul.f32 %v314, %v314
    %v443 = vmul.f32 %v315, %v315
    %v444 = vmul.f32 %v316, %v316
    %v445 = vmul.f32 %v317, %v317
    %v446 = vmul.f32 %v318, %v318
    %v447 = vmul.f32 %v319, %v319
    %v448 = vmul.f32 %v320, %v320
    %v449 = vmul.f32 %v321, %v321
    %v450 = vmul.f32 %v322, %v322
    %v451 = vmul.f32 %v323, %v323
    %v452 = vmul.f32 %v324, %v324
    %v453 = vld [vmem:[#allocation5] sm:$0xff]
    %v454 = vld [vmem:[#allocation5 + $0x8] sm:$0xff]
    %v455 = vld [vmem:[#allocation5 + $0x10] sm:$0xff]
    %v456 = vld [vmem:[#allocation5 + $0x18] sm:$0xff]
    %v457 = vld [vmem:[#allocation5 + $0x20] sm:$0xff]
    %v458 = vld [vmem:[#allocation5 + $0x28] sm:$0xff]
    %v459 = vld [vmem:[#allocation5 + $0x30] sm:$0xff]
    %v460 = vld [vmem:[#allocation5 + $0x38] sm:$0xff]
    %v461 = vld [vmem:[#allocation5 + $0x40] sm:$0xff]
    %v462 = vld [vmem:[#allocation5 + $0x48] sm:$0xff]
    %v463 = vld [vmem:[#allocation5 + $0x50] sm:$0xff]
    %v464 = vld [vmem:[#allocation5 + $0x58] sm:$0xff]
    %v465 = vld [vmem:[#allocation5 + $0x60] sm:$0xff]
    %v466 = vld [vmem:[#allocation5 + $0x68] sm:$0xff]
    %v467 = vld [vmem:[#allocation5 + $0x70] sm:$0xff]
    %v468 = vld [vmem:[#allocation5 + $0x78] sm:$0xff]
    %v469 = vld [vmem:[#allocation5 + $0x80] sm:$0xff]
    %v470 = vld [vmem:[#allocation5 + $0x88] sm:$0xff]
    %v471 = vld [vmem:[#allocation5 + $0x90] sm:$0xff]
    %v472 = vld [vmem:[#allocation5 + $0x98] sm:$0xff]
    %v473 = vld [vmem:[#allocation5 + $0xa0] sm:$0xff]
    %v474 = vld [vmem:[#allocation5 + $0xa8] sm:$0xff]
    %v475 = vld [vmem:[#allocation5 + $0xb0] sm:$0xff]
    %v476 = vld [vmem:[#allocation5 + $0xb8] sm:$0xff]
    %v477 = vld [vmem:[#allocation5 + $0xc0] sm:$0xff]
    %v478 = vld [vmem:[#allocation5 + $0xc8] sm:$0xff]
    %v479 = vld [vmem:[#allocation5 + $0xd0] sm:$0xff]
    %v480 = vld [vmem:[#allocation5 + $0xd8] sm:$0xff]
    %v481 = vld [vmem:[#allocation5 + $0xe0] sm:$0xff]
    %v482 = vld [vmem:[#allocation5 + $0xe8] sm:$0xff]
    %v483 = vld [vmem:[#allocation5 + $0xf0] sm:$0xff]
    %v484 = vld [vmem:[#allocation5 + $0xf8] sm:$0xff]
    %v485 = vadd.f32 %v325, %v357
    %v486 = vadd.f32 %v485, %v389
    %v487 = vadd.f32 %v486, %v421
    %v488 = vadd.f32 %v326, %v358
    %v489 = vadd.f32 %v488, %v390
    %v490 = vadd.f32 %v489, %v422
    %v491 = vadd.f32 %v327, %v359
    %v492 = vadd.f32 %v491, %v391
    %v493 = vadd.f32 %v492, %v423
    %v494 = vadd.f32 %v328, %v360
    %v495 = vadd.f32 %v494, %v392
    %v496 = vadd.f32 %v495, %v424
    %v497 = vadd.f32 %v329, %v361
    %v498 = vadd.f32 %v497, %v393
    %v499 = vadd.f32 %v498, %v425
    %v500 = vadd.f32 %v330, %v362
    %v501 = vadd.f32 %v500, %v394
    %v502 = vadd.f32 %v501, %v426
    %v503 = vadd.f32 %v331, %v363
    %v504 = vadd.f32 %v503, %v395
    %v505 = vadd.f32 %v504, %v427
    %v506 = vadd.f32 %v332, %v364
    %v507 = vadd.f32 %v506, %v396
    %v508 = vadd.f32 %v507, %v428
    %v509 = vadd.f32 %v333, %v365
    %v510 = vadd.f32 %v509, %v397
    %v511 = vadd.f32 %v510, %v429
    %v512 = vadd.f32 %v334, %v366
    %v513 = vadd.f32 %v512, %v398
    %v514 = vadd.f32 %v513, %v430
    %v515 = vadd.f32 %v335, %v367
    %v516 = vadd.f32 %v515, %v399
    %v517 = vadd.f32 %v516, %v431
    %v518 = vadd.f32 %v336, %v368
    %v519 = vadd.f32 %v518, %v400
    %v520 = vadd.f32 %v519, %v432
    %v521 = vadd.f32 %v337, %v369
    %v522 = vadd.f32 %v521, %v401
    %v523 = vadd.f32 %v522, %v433
    %v524 = vadd.f32 %v338, %v370
    %v525 = vadd.f32 %v524, %v402
    %v526 = vadd.f32 %v525, %v434
    %v527 = vadd.f32 %v339, %v371
    %v528 = vadd.f32 %v527, %v403
    %v529 = vadd.f32 %v528, %v435
    %v530 = vadd.f32 %v340, %v372
    %v531 = vadd.f32 %v530, %v404
    %v532 = vadd.f32 %v531, %v436
    %v533 = vadd.f32 %v341, %v373
    %v534 = vadd.f32 %v533, %v405
    %v535 = vadd.f32 %v534, %v437
    %v536 = vadd.f32 %v342, %v374
    %v537 = vadd.f32 %v536, %v406
    %v538 = vadd.f32 %v537, %v438
    %v539 = vadd.f32 %v343, %v375
    %v540 = vadd.f32 %v539, %v407
    %v541 = vadd.f32 %v540, %v439
    %v542 = vadd.f32 %v344, %v376
    %v543 = vadd.f32 %v542, %v408
    %v544 = vadd.f32 %v543, %v440
    %v545 = vadd.f32 %v345, %v377
    %v546 = vadd.f32 %v545, %v409
    %v547 = vadd.f32 %v546, %v441
    %v548 = vadd.f32 %v346, %v378
    %v549 = vadd.f32 %v548, %v410
    %v550 = vadd.f32 %v549, %v442
    %v551 = vadd.f32 %v347, %v379
    %v552 = vadd.f32 %v551, %v411
    %v553 = vadd.f32 %v552, %v443
    %v554 = vadd.f32 %v348, %v380
    %v555 = vadd.f32 %v554, %v412
    %v556 = vadd.f32 %v555, %v444
    %v557 = vadd.f32 %v349, %v381
    %v558 = vadd.f32 %v557, %v413
    %v559 = vadd.f32 %v558, %v445
    %v560 = vadd.f32 %v350, %v382
    %v561 = vadd.f32 %v560, %v414
    %v562 = vadd.f32 %v561, %v446
    %v563 = vadd.f32 %v351, %v383
    %v564 = vadd.f32 %v563, %v415
    %v565 = vadd.f32 %v564, %v447
    %v566 = vadd.f32 %v352, %v384
    %v567 = vadd.f32 %v566, %v416
    %v568 = vadd.f32 %v567, %v448
    %v569 = vadd.f32 %v353, %v385
    %v570 = vadd.f32 %v569, %v417
    %v571 = vadd.f32 %v570, %v449
    %v572 = vadd.f32 %v354, %v386
    %v573 = vadd.f32 %v572, %v418
    %v574 = vadd.f32 %v573, %v450
    %v575 = vadd.f32 %v355, %v387
    %v576 = vadd.f32 %v575, %v419
    %v577 = vadd.f32 %v576, %v451
    %v578 = vadd.f32 %v356, %v388
    %v579 = vadd.f32 %v578, %v420
    %v580 = vadd.f32 %v579, %v452
    %v581 = vadd.f32 %v453, %v487
    %v582 = vadd.f32 %v454, %v490
    %v583 = vadd.f32 %v455, %v493
    %v584 = vadd.f32 %v456, %v496
    %v585 = vadd.f32 %v457, %v499
    %v586 = vadd.f32 %v458, %v502
    %v587 = vadd.f32 %v459, %v505
    %v588 = vadd.f32 %v460, %v508
    %v589 = vadd.f32 %v461, %v511
    %v590 = vadd.f32 %v462, %v514
    %v591 = vadd.f32 %v463, %v517
    %v592 = vadd.f32 %v464, %v520
    %v593 = vadd.f32 %v465, %v523
    %v594 = vadd.f32 %v466, %v526
    %v595 = vadd.f32 %v467, %v529
    %v596 = vadd.f32 %v468, %v532
    %v597 = vadd.f32 %v469, %v535
    %v598 = vadd.f32 %v470, %v538
    %v599 = vadd.f32 %v471, %v541
    %v600 = vadd.f32 %v472, %v544
    %v601 = vadd.f32 %v473, %v547
    %v602 = vadd.f32 %v474, %v550
    %v603 = vadd.f32 %v475, %v553
    %v604 = vadd.f32 %v476, %v556
    %v605 = vadd.f32 %v477, %v559
    %v606 = vadd.f32 %v478, %v562
    %v607 = vadd.f32 %v479, %v565
    %v608 = vadd.f32 %v480, %v568
    %v609 = vadd.f32 %v481, %v571
    %v610 = vadd.f32 %v482, %v574
    %v611 = vadd.f32 %v483, %v577
    %v612 = vadd.f32 %v484, %v580
    %613 = vst [vmem:[#allocation5] sm:$0xff] %v581
    %614 = vst [vmem:[#allocation5 + $0x8] sm:$0xff] %v582
    %615 = vst [vmem:[#allocation5 + $0x10] sm:$0xff] %v583
    %616 = vst [vmem:[#allocation5 + $0x18] sm:$0xff] %v584
    %617 = vst [vmem:[#allocation5 + $0x20] sm:$0xff] %v585
    %618 = vst [vmem:[#allocation5 + $0x28] sm:$0xff] %v586
    %619 = vst [vmem:[#allocation5 + $0x30] sm:$0xff] %v587
    %620 = vst [vmem:[#allocation5 + $0x38] sm:$0xff] %v588
    %621 = vst [vmem:[#allocation5 + $0x40] sm:$0xff] %v589
    %622 = vst [vmem:[#allocation5 + $0x48] sm:$0xff] %v590
    %623 = vst [vmem:[#allocation5 + $0x50] sm:$0xff] %v591
    %624 = vst [vmem:[#allocation5 + $0x58] sm:$0xff] %v592
    %625 = vst [vmem:[#allocation5 + $0x60] sm:$0xff] %v593
    %626 = vst [vmem:[#allocation5 + $0x68] sm:$0xff] %v594
    %627 = vst [vmem:[#allocation5 + $0x70] sm:$0xff] %v595
    %628 = vst [vmem:[#allocation5 + $0x78] sm:$0xff] %v596
    %629 = vst [vmem:[#allocation5 + $0x80] sm:$0xff] %v597
    %630 = vst [vmem:[#allocation5 + $0x88] sm:$0xff] %v598
    %631 = vst [vmem:[#allocation5 + $0x90] sm:$0xff] %v599
    %632 = vst [vmem:[#allocation5 + $0x98] sm:$0xff] %v600
    %633 = vst [vmem:[#allocation5 + $0xa0] sm:$0xff] %v601
    %634 = vst [vmem:[#allocation5 + $0xa8] sm:$0xff] %v602
    %635 = vst [vmem:[#allocation5 + $0xb0] sm:$0xff] %v603
    %636 = vst [vmem:[#allocation5 + $0xb8] sm:$0xff] %v604
    %637 = vst [vmem:[#allocation5 + $0xc0] sm:$0xff] %v605
    %638 = vst [vmem:[#allocation5 + $0xc8] sm:$0xff] %v606
    %639 = vst [vmem:[#allocation5 + $0xd0] sm:$0xff] %v607
    %640 = vst [vmem:[#allocation5 + $0xd8] sm:$0xff] %v608
    %641 = vst [vmem:[#allocation5 + $0xe0] sm:$0xff] %v609
    %642 = vst [vmem:[#allocation5 + $0xe8] sm:$0xff] %v610
    %643 = vst [vmem:[#allocation5 + $0xf0] sm:$0xff] %v611
    %644 = vst [vmem:[#allocation5 + $0xf8] sm:$0xff] %v612
    // Predicated region
    $region14: #{tpu_custom_call.1} parent=1 // pred_check
      _
    $region15: #{tpu_custom_call.1} parent=1 // pred_check_branch
      %646 = sbr.rel (0) target = $region17
    $region16: #{tpu_custom_call.1} parent=1 // pred_region
      %s648 = ssub.s32 4096, 4096
      %649 = vsyncadd [#allocation4], %s648
      %s650 = sshll.u32 [#allocation5], 4
      %s651 = int_to_ptr.vmem [resolvable:$true] %s650
      %656 = dma.vmem_to_hbm [thread:$0]  %s651, 4096, %s1, [#allocation4], 128, 128, 8
    $region17: #{tpu_custom_call.1} parent=1 // pred_fallthru
      _
    // Predicated region
    $region18: #{tpu_custom_call.1} parent=1 // pred_check
      _
    $region19: #{tpu_custom_call.1} parent=1 // pred_check_branch
      %658 = sbr.rel (0) target = $region21
    $region20: #{tpu_custom_call.1} parent=1 // pred_region
      %659 = dma.done [#allocation4], 4096
    $region21: #{tpu_custom_call.1} parent=1 // pred_fallthru
      _
    %660 = vsyncpa [#allocation3], 1
    %661 = vsyncpa [#allocation4], 1

</llo_original>
